<compile_context>
chip_gen: v5e
topology: v5e:2x2
jax: 0.10.0
libtpu: 0.0.40
codegen_flags: <defaults>
</compile_context>

<pallas_src>
import jax
import jax.numpy as jnp
from jax.experimental import pallas as pl
from jax.experimental.pallas import tpu as pltpu


# ----------------------------- Pallas kernel --------------------------------
def _invres_kernel(r_ref, q_ref, idn_ref,
                   b1_ref, w2_ref, b2_ref, w3_ref, b3_ref,
                   out_ref, rmax_ref):
    k = pl.program_id(1)

    @pl.when(k == 0)
    def _init():
        rmax_ref[...] = jnp.full_like(rmax_ref, -jnp.inf)

    # Running channelwise max over the K neighbors (conv hoisted out -> pure VPU).
    rmax_ref[...] = jnp.maximum(rmax_ref[...], r_ref[0].astype(jnp.float32))

    @pl.when(k == pl.num_programs(1) - 1)
    def _finalize():
        # LocalAggregation epilogue:  ReLU(max_k r - q + b1)
        # (exact rewrite of max_k ReLU(conv([dp_k, fj_k]) + b1): ReLU/max commute and
        #  q, b1 do not depend on k)
        f = jnp.maximum(rmax_ref[...] - q_ref[...] + b1_ref[...], 0.0)

        # pwconv[0]: 1x1 Conv1d + folded BN + ReLU   (bf16 MXU operands, f32 accum)
        g = jnp.dot(f.astype(jnp.bfloat16), w2_ref[...],
                    preferred_element_type=jnp.float32) + b2_ref[...]
        g = jnp.maximum(g, 0.0)

        # pwconv[1]: 1x1 Conv1d + folded BN (no activation)
        o = jnp.dot(g.astype(jnp.bfloat16), w3_ref[...],
                    preferred_element_type=jnp.float32) + b3_ref[...]

        # residual + final ReLU
        out_ref[...] = jnp.maximum(o + idn_ref[...], 0.0).astype(out_ref.dtype)


def invres_mlp_pallas(r_p, q_p, idn_p, params_p, *, tile_m):
    """r_p:(K,M,GC) bf16, q_p/idn_p:(M,GC) f32 -> (M,GC) f32."""
    K, M, GC = r_p.shape
    b1t, w2k, b2t, w3k, b3t = params_p
    assert M % tile_m == 0
    wmap = lambda i, k: (0, 0)

    return pl.pallas_call(
        _invres_kernel,
        out_shape=jax.ShapeDtypeStruct((M, GC), jnp.float32),
        grid_spec=pltpu.PrefetchScalarGridSpec(
            num_scalar_prefetch=0,
            grid=(M // tile_m, K),                         # K last = reduction axis
            in_specs=[
                pl.BlockSpec((1, tile_m, GC), lambda i, k: (k, i, 0)),   # r stream
                pl.BlockSpec((tile_m, GC), lambda i, k: (i, 0)),         # q (per-query)
                pl.BlockSpec((tile_m, GC), lambda i, k: (i, 0)),         # identity
                pl.BlockSpec(b1t.shape, wmap),
                pl.BlockSpec(w2k.shape, wmap),
                pl.BlockSpec(b2t.shape, wmap),
                pl.BlockSpec(w3k.shape, wmap),
                pl.BlockSpec(b3t.shape, wmap),
            ],
            out_specs=pl.BlockSpec((tile_m, GC), lambda i, k: (i, 0)),
            scratch_shapes=[pltpu.VMEM((tile_m, GC), jnp.float32)],      # running max
        ),
        compiler_params=pltpu.CompilerParams(
            dimension_semantics=("parallel", "arbitrary")),
    )(r_p, q_p, idn_p, b1t, w2k, b2t, w3k, b3t)


# ------------------------------ JAX glue -------------------------------------
def ball_query(p, radius, nsample):
    """p: (B, N, 3). Returns neighbor indices (B, N, nsample).

    First `nsample` points (in index order) within `radius`; missing slots are
    filled with the first valid neighbor (the query itself is always valid)."""
    d2 = jnp.sum((p[:, :, None, :] - p[:, None, :, :]) ** 2, axis=-1)   # (B,N,N)
    within = d2 < radius * radius
    N = p.shape[1]
    order = jnp.arange(N)[None, None, :]
    key = jnp.where(within, order, N)
    idx = jnp.argsort(key, axis=-1)[:, :, :nsample]                     # (B,N,K)
    cnt = jnp.sum(within, axis=-1, keepdims=True)                       # (B,N,1)
    rank = jnp.arange(nsample)[None, None, :]
    idx = jnp.where(rank < cnt, idx, idx[:, :, :1])
    return idx


def group_features(p, f_nc, idx):
    """(used only by the reference) p:(B,N,3), f_nc:(B,N,C), idx:(B,N,K)."""
    def one(p_b, f_b, idx_b):
        return p_b[idx_b], f_b[idx_b]
    pj, fj = jax.vmap(one)(p, f_nc, idx)
    dp = pj - p[:, :, None, :]
    return dp, fj


def fold_bn(gamma, beta, mean, var, eps=1e-5):
    scale = gamma / jnp.sqrt(var + eps)
    bias = beta - mean * scale
    return scale[None, :], bias[None, :]


def make_params(key, in_channels):
    C = in_channels
    Cin = C + 3                      # CHANNEL_MAP['dp_fj'](C) = 3 + C
    ks = jax.random.split(key, 15)
    w1 = 0.1 * jax.random.normal(ks[0], (Cin, C), jnp.float32)
    w2 = 0.1 * jax.random.normal(ks[1], (C, C), jnp.float32)
    w3 = 0.1 * jax.random.normal(ks[2], (C, C), jnp.float32)

    def bn(k0, k1, k2, k3, n):
        gamma = jax.random.uniform(k0, (n,), jnp.float32, 0.5, 1.5)
        beta = 0.1 * jax.random.normal(k1, (n,), jnp.float32)
        mean = 0.1 * jax.random.normal(k2, (n,), jnp.float32)
        var = jax.random.uniform(k3, (n,), jnp.float32, 0.5, 1.5)
        return fold_bn(gamma, beta, mean, var)

    s1, b1 = bn(ks[3], ks[4], ks[5], ks[6], C)
    s2, b2 = bn(ks[7], ks[8], ks[9], ks[10], C)
    s3, b3 = bn(ks[11], ks[12], ks[13], ks[14], C)
    return (w1, s1, b1, w2, s2, b2, w3, s3, b3)


def _pack_neighbors(x, G):
    """x: (B, N, K, D) -> (K, B*N//G, G*D) with G consecutive points per row."""
    B, N, K, D = x.shape
    x = jnp.transpose(x, (2, 0, 1, 3)).reshape(K, B * N, D)
    return x.reshape(K, (B * N) // G, G * D)


def _choose_tile_m(M, target_rows, G):
    """Sublane-aligned tile of the packed (M, G*C) row axis; keep >=2 parallel steps."""
    t = max(16, min(target_rows // max(G, 1), M))
    t -= t % 16                                   # bf16 stream: 16-sublane aligned
    if t <= 0:
        return M
    while t > 16 and M % t != 0:
        t -= 16
    if M % t != 0:
        return M                                  # full-extent block is always legal
    if M // t < 2 and M % 2 == 0 and (M // 2) % 16 == 0:
        t = M // 2                                # v7x megacore: >= 2 parallel steps
    return t


def reference(dp, fj, f_nc, params):
    w1, s1, b1, w2, s2, b2, w3, s3, b3 = params
    xg = jnp.concatenate([dp, fj], axis=-1)                             # (B,N,K,3+C)
    h = jnp.maximum(jnp.einsum('bnkc,cd->bnkd', xg, w1) * s1 + b1, 0.0)
    f = jnp.max(h, axis=2)
    g = jnp.maximum(f @ w2 * s2 + b2, 0.0)
    o = g @ w3 * s3 + b3
    return jnp.maximum(o + f_nc, 0.0)


def invres_mlp_forward(p, f_cn, params, *, radius=0.25, nsample=16,
                       tile_rows=4096, neighbor_dtype=jnp.bfloat16):
    """PyTorch-facing API: p:(B,N,3), f:(B,C,N) -> [p, f_out:(B,C,N)]."""
    B, C, N = f_cn.shape
    f_nc = jnp.transpose(f_cn, (0, 2, 1))                  # (B, N, C)
    idx = ball_query(p, radius, nsample)                   # (B, N, K)

    w1, s1, b1, w2, s2, b2, w3, s3, b3 = params
    w1f = w1 * s1                                          # BN scale folded: (3+C, C)

    # Hoisted LocalAggregation conv (once per point, not per point*neighbor):
    #   q = p @ w1d',  r = q + f @ w1f'   =>   conv([dp_k, fj_k]) = r[idx] - q
    q = jnp.einsum('bnd,dc->bnc', p, w1f[:3])              # (B,N,C)
    r = q + jnp.einsum('bnc,cd->bnd', f_nc, w1f[3:])       # (B,N,C)
    r_g = jax.vmap(lambda rb, ib: rb[ib])(r, idx)          # (B,N,K,C) gathered table

    # Lane-packing factor: G consecutive points share one 128-wide lane row.
    G = 128 // C if (C < 128 and 128 % C == 0) else 1
    R_rows = B * N
    assert R_rows % G == 0, "B*N must be divisible by the lane-packing factor"
    M = R_rows // G
    GC = G * C
    tile_m = _choose_tile_m(M, tile_rows, G)

    r_p = _pack_neighbors(r_g, G).astype(neighbor_dtype)   # (K, M, GC) dominant stream
    q_p = q.reshape(M, GC).astype(jnp.float32)             # (M, GC)
    idn_p = f_nc.reshape(M, GC).astype(jnp.float32)        # (M, GC)

    # pwconv params: fold BN scale, expand block-diagonal (kron) for lane packing.
    eye = jnp.eye(G, dtype=jnp.float32)
    w2k = jnp.kron(eye, w2 * s2).astype(jnp.bfloat16)      # (GC, GC)
    w3k = jnp.kron(eye, w3 * s3).astype(jnp.bfloat16)
    b1t = jnp.tile(b1, (1, G)).astype(jnp.float32)         # (1, GC)
    b2t = jnp.tile(b2, (1, G)).astype(jnp.float32)
    b3t = jnp.tile(b3, (1, G)).astype(jnp.float32)

    out_p = invres_mlp_pallas(r_p, q_p, idn_p, (b1t, w2k, b2t, w3k, b3t),
                              tile_m=tile_m)
    out_nc = out_p.reshape(B, N, C)
    return [p, jnp.transpose(out_nc, (0, 2, 1))], (out_nc, f_nc, idx)


# -------------------------------- main ---------------------------------------
if __name__ == "__main__":
    B, C, N, K = 2, 32, 512, 16

    key = jax.random.PRNGKey(0)
    kp, kf, kw = jax.random.split(key, 3)
    p = jax.random.uniform(kp, (B, N, 3), jnp.float32)        # points (B,N,3)
    f = jax.random.normal(kf, (B, C, N), jnp.float32)         # features (B,C,N) as in PyTorch
    params = make_params(kw, C)

    [p_out, f_out], (out_nc, f_nc, idx) = invres_mlp_forward(
        p, f, params, radius=0.25, nsample=K)
    f_out = jax.block_until_ready(f_out)

    # Pure-JAX f32 reference (same grouper output, un-hoisted math).
    dp, fj = group_features(p, f_nc, idx)
    ref = reference(dp, fj, f_nc, params)

    assert f_out.shape == (B, C, N)
    # bf16 on the streamed neighbor table / MXU operands -> relaxed tolerance.
    assert jnp.allclose(out_nc, ref, atol=5e-2, rtol=5e-2), "mismatch vs reference"

    print("KERNEL_OK")
</pallas_src>

<mosaic_0001>
module attributes {stable_mosaic.version = 11 : i64} {
  func.func @_invres_kernel(%arg0: i32, %arg1: i32, %arg2: memref<1x128x128xbf16, #tpu.memory_space<vmem>>, %arg3: memref<128x128xf32, #tpu.memory_space<vmem>>, %arg4: memref<128x128xf32, #tpu.memory_space<vmem>>, %arg5: memref<1x128xf32, #tpu.memory_space<vmem>>, %arg6: memref<128x128xbf16, #tpu.memory_space<vmem>>, %arg7: memref<1x128xf32, #tpu.memory_space<vmem>>, %arg8: memref<128x128xbf16, #tpu.memory_space<vmem>>, %arg9: memref<1x128xf32, #tpu.memory_space<vmem>>, %arg10: memref<128x128xf32, #tpu.memory_space<vmem>>, %arg11: memref<128x128xf32, #tpu.memory_space<vmem>>) attributes {dimension_semantics = [#tpu.dimension_semantics<parallel>, #tpu.dimension_semantics<arbitrary>], iteration_bounds = array<i64: 2, 16>, scalar_prefetch = 0 : i64, scratch_operands = 1 : i64, tpu.core_type = #tpu.core_type<tc>, window_params = [{transform_indices = @transform_0, window_bounds = array<i64: 1, 128, 128>}, {transform_indices = @transform_1, window_bounds = array<i64: 128, 128>}, {transform_indices = @transform_2, window_bounds = array<i64: 128, 128>}, {pipeline_mode = #tpu.pipeline_mode<synchronous>, transform_indices = @transform_3, window_bounds = array<i64: 1, 128>}, {pipeline_mode = #tpu.pipeline_mode<synchronous>, transform_indices = @transform_4, window_bounds = array<i64: 128, 128>}, {pipeline_mode = #tpu.pipeline_mode<synchronous>, transform_indices = @transform_5, window_bounds = array<i64: 1, 128>}, {pipeline_mode = #tpu.pipeline_mode<synchronous>, transform_indices = @transform_6, window_bounds = array<i64: 128, 128>}, {pipeline_mode = #tpu.pipeline_mode<synchronous>, transform_indices = @transform_7, window_bounds = array<i64: 1, 128>}, {transform_indices = @transform_8, window_bounds = array<i64: 128, 128>}]} {
    %c0_i32 = arith.constant 0 : i32
    %0 = arith.cmpi eq, %arg1, %c0_i32 : i32
    %1 = arith.extui %0 : i1 to i32
    %c0_i32_0 = arith.constant 0 : i32
    %2 = arith.cmpi ne, %1, %c0_i32_0 : i32
    scf.if %2 {
      %cst = arith.constant 0xFF800000 : f32
      %12 = vector.broadcast %cst : f32 to vector<128x128xf32>
      %c0_8 = arith.constant 0 : index
      %c0_9 = arith.constant 0 : index
      %13 = vector.load %arg11[%c0_8, %c0_9] : memref<128x128xf32, #tpu.memory_space<vmem>>, vector<128x128xf32>
      tpu.vector_store %arg11[%c0_8, %c0_9], %12 {strides = array<i32>} : memref<128x128xf32, #tpu.memory_space<vmem>>, vector<128x128xf32>,
    } else {
    }
    %c0 = arith.constant 0 : index
    %c0_1 = arith.constant 0 : index
    %3 = vector.load %arg11[%c0, %c0_1] : memref<128x128xf32, #tpu.memory_space<vmem>>, vector<128x128xf32>
    %c0_2 = arith.constant 0 : index
    %c0_3 = arith.constant 0 : index
    %c0_4 = arith.constant 0 : index
    %4 = vector.load %arg2[%c0_2, %c0_3, %c0_4] : memref<1x128x128xbf16, #tpu.memory_space<vmem>>, vector<1x128x128xbf16>
    %5 = vector.shape_cast %4 : vector<1x128x128xbf16> to vector<128x128xbf16>
    %6 = arith.extf %5 : vector<128x128xbf16> to vector<128x128xf32>
    %7 = arith.maximumf %3, %6 : vector<128x128xf32>
    %c0_5 = arith.constant 0 : index
    %c0_6 = arith.constant 0 : index
    %8 = vector.load %arg11[%c0_5, %c0_6] : memref<128x128xf32, #tpu.memory_space<vmem>>, vector<128x128xf32>
    tpu.vector_store %arg11[%c0_5, %c0_6], %7 {strides = array<i32>} : memref<128x128xf32, #tpu.memory_space<vmem>>, vector<128x128xf32>,
    %c15_i32 = arith.constant 15 : i32
    %9 = arith.cmpi eq, %arg1, %c15_i32 : i32
    %10 = arith.extui %9 : i1 to i32
    %c0_i32_7 = arith.constant 0 : i32
    %11 = arith.cmpi ne, %10, %c0_i32_7 : i32
    scf.if %11 {
      %c0_8 = arith.constant 0 : index
      %c0_9 = arith.constant 0 : index
      %12 = vector.load %arg11[%c0_8, %c0_9] : memref<128x128xf32, #tpu.memory_space<vmem>>, vector<128x128xf32>
      %c0_10 = arith.constant 0 : index
      %c0_11 = arith.constant 0 : index
      %13 = vector.load %arg3[%c0_10, %c0_11] : memref<128x128xf32, #tpu.memory_space<vmem>>, vector<128x128xf32>
      %14 = arith.subf %12, %13 : vector<128x128xf32>
      %c0_12 = arith.constant 0 : index
      %c0_13 = arith.constant 0 : index
      %15 = vector.load %arg5[%c0_12, %c0_13] : memref<1x128xf32, #tpu.memory_space<vmem>>, vector<1x128xf32>
      %16 = vector.broadcast %15 : vector<1x128xf32> to vector<128x128xf32>
      %17 = arith.addf %14, %16 : vector<128x128xf32>
      %cst = arith.constant 0.000000e+00 : f32
      %18 = vector.broadcast %cst : f32 to vector<128x128xf32>
      %19 = arith.maximumf %17, %18 : vector<128x128xf32>
      %20 = arith.truncf %19 : vector<128x128xf32> to vector<128x128xbf16>
      %c0_14 = arith.constant 0 : index
      %c0_15 = arith.constant 0 : index
      %21 = vector.load %arg6[%c0_14, %c0_15] : memref<128x128xbf16, #tpu.memory_space<vmem>>, vector<128x128xbf16>
      %cst_16 = arith.constant dense<0.000000e+00> : vector<128x128xf32>
      %22 = tpu.matmul %20, %21, %cst_16 {dimension_numbers = #tpu.dot_dimension_numbers<[1], [0], [0], [1], [0, 0, 1, 1], [], []>} : vector<128x128xbf16>, vector<128x128xbf16>, vector<128x128xf32> -> vector<128x128xf32>
      %c0_17 = arith.constant 0 : index
      %c0_18 = arith.constant 0 : index
      %23 = vector.load %arg7[%c0_17, %c0_18] : memref<1x128xf32, #tpu.memory_space<vmem>>, vector<1x128xf32>
      %24 = vector.broadcast %23 : vector<1x128xf32> to vector<128x128xf32>
      %25 = arith.addf %22, %24 : vector<128x128xf32>
      %cst_19 = arith.constant 0.000000e+00 : f32
      %26 = vector.broadcast %cst_19 : f32 to vector<128x128xf32>
      %27 = arith.maximumf %25, %26 : vector<128x128xf32>
      %28 = arith.truncf %27 : vector<128x128xf32> to vector<128x128xbf16>
      %c0_20 = arith.constant 0 : index
      %c0_21 = arith.constant 0 : index
      %29 = vector.load %arg8[%c0_20, %c0_21] : memref<128x128xbf16, #tpu.memory_space<vmem>>, vector<128x128xbf16>
      %cst_22 = arith.constant dense<0.000000e+00> : vector<128x128xf32>
      %30 = tpu.matmul %28, %29, %cst_22 {dimension_numbers = #tpu.dot_dimension_numbers<[1], [0], [0], [1], [0, 0, 1, 1], [], []>} : vector<128x128xbf16>, vector<128x128xbf16>, vector<128x128xf32> -> vector<128x128xf32>
      %c0_23 = arith.constant 0 : index
      %c0_24 = arith.constant 0 : index
      %31 = vector.load %arg9[%c0_23, %c0_24] : memref<1x128xf32, #tpu.memory_space<vmem>>, vector<1x128xf32>
      %32 = vector.broadcast %31 : vector<1x128xf32> to vector<128x128xf32>
      %33 = arith.addf %30, %32 : vector<128x128xf32>
      %c0_25 = arith.constant 0 : index
      %c0_26 = arith.constant 0 : index
      %34 = vector.load %arg4[%c0_25, %c0_26] : memref<128x128xf32, #tpu.memory_space<vmem>>, vector<128x128xf32>
      %35 = arith.addf %33, %34 : vector<128x128xf32>
      %cst_27 = arith.constant 0.000000e+00 : f32
      %36 = vector.broadcast %cst_27 : f32 to vector<128x128xf32>
      %37 = arith.maximumf %35, %36 : vector<128x128xf32>
      %c0_28 = arith.constant 0 : index
      %c0_29 = arith.constant 0 : index
      %38 = vector.load %arg10[%c0_28, %c0_29] : memref<128x128xf32, #tpu.memory_space<vmem>>, vector<128x128xf32>
      tpu.vector_store %arg10[%c0_28, %c0_29], %37 {strides = array<i32>} : memref<128x128xf32, #tpu.memory_space<vmem>>, vector<128x128xf32>,
    } else {
    }
    return
  }
  func.func @transform_0(%arg0: i32, %arg1: i32) -> (i32, i32, i32) {
    %c0_i32 = arith.constant 0 : i32
    %c0_i32_0 = arith.constant 0 : i32
    return %arg1, %arg0, %c0_i32 : i32, i32, i32
  }
  func.func @transform_1(%arg0: i32, %arg1: i32) -> (i32, i32) {
    %c0_i32 = arith.constant 0 : i32
    %c0_i32_0 = arith.constant 0 : i32
    return %arg0, %c0_i32 : i32, i32
  }
  func.func @transform_2(%arg0: i32, %arg1: i32) -> (i32, i32) {
    %c0_i32 = arith.constant 0 : i32
    %c0_i32_0 = arith.constant 0 : i32
    return %arg0, %c0_i32 : i32, i32
  }
  func.func @transform_3(%arg0: i32, %arg1: i32) -> (i32, i32) {
    %c0_i32 = arith.constant 0 : i32
    %c0_i32_0 = arith.constant 0 : i32
    %c0_i32_1 = arith.constant 0 : i32
    return %c0_i32, %c0_i32_0 : i32, i32
  }
  func.func @transform_4(%arg0: i32, %arg1: i32) -> (i32, i32) {
    %c0_i32 = arith.constant 0 : i32
    %c0_i32_0 = arith.constant 0 : i32
    %c0_i32_1 = arith.constant 0 : i32
    return %c0_i32, %c0_i32_0 : i32, i32
  }
  func.func @transform_5(%arg0: i32, %arg1: i32) -> (i32, i32) {
    %c0_i32 = arith.constant 0 : i32
    %c0_i32_0 = arith.constant 0 : i32
    %c0_i32_1 = arith.constant 0 : i32
    return %c0_i32, %c0_i32_0 : i32, i32
  }
  func.func @transform_6(%arg0: i32, %arg1: i32) -> (i32, i32) {
    %c0_i32 = arith.constant 0 : i32
    %c0_i32_0 = arith.constant 0 : i32
    %c0_i32_1 = arith.constant 0 : i32
    return %c0_i32, %c0_i32_0 : i32, i32
  }
  func.func @transform_7(%arg0: i32, %arg1: i32) -> (i32, i32) {
    %c0_i32 = arith.constant 0 : i32
    %c0_i32_0 = arith.constant 0 : i32
    %c0_i32_1 = arith.constant 0 : i32
    return %c0_i32, %c0_i32_0 : i32, i32
  }
  func.func @transform_8(%arg0: i32, %arg1: i32) -> (i32, i32) {
    %c0_i32 = arith.constant 0 : i32
    %c0_i32_0 = arith.constant 0 : i32
    return %arg0, %c0_i32 : i32, i32
  }
}

</mosaic_0001>

<llo_original>
// kernel: tpu_custom_call.1
$region0: #{tpu_custom_call.1}
  #allocation0 [shape = 'u32[]', space=smem, size = 0x4, offset = 0x4, fixed_abs, tag = 'smem constant byte address 0x4 - core index']
  #allocation1 [shape = 'u32[72,128]{1,0:T(1,128)}', space=vmem, size = 0x9000, scoped, tag = 'internal scratch']
  #allocation2 [shape = 'f32[128,128]{1,0:T(8,128)}', space=vmem, size = 0x10000, scoped, tag = 'scratch operand']
  %s0 = inlined_call_operand.hbm [shape: bf16[16,256,128], index: 0, kind: input, shape index: {}]
  %s1 = inlined_call_operand.hbm [shape: f32[256,128], index: 1, kind: input, shape index: {}]
  %s2 = inlined_call_operand.hbm [shape: f32[256,128], index: 2, kind: input, shape index: {}]
  %s3 = inlined_call_operand.vmem [shape: f32[1,128], index: 3, kind: input, shape index: {}]
  %s4 = inlined_call_operand.hbm [shape: bf16[128,128], index: 4, kind: input, shape index: {}]
  %s5 = inlined_call_operand.vmem [shape: f32[1,128], index: 5, kind: input, shape index: {}]
  %s6 = inlined_call_operand.hbm [shape: bf16[128,128], index: 6, kind: input, shape index: {}]
  %s7 = inlined_call_operand.vmem [shape: f32[1,128], index: 7, kind: input, shape index: {}]
  %s8 = inlined_call_operand.hbm [shape: f32[256,128], index: 8, kind: output, shape index: {}]
  %s9 = sld [smem:[#allocation0]]
  $region93: #{tpu_custom_call.1} parent=0
    _
  %s11 = ssub.s32 1, %s9
  %s12 = scalar_select 0, %s11, %s9
  $region1: #{tpu_custom_call.1} parent=0
    #allocation3 [shape = 'u8[65536]{0}', space=vmem, size = 0x10000, scoped, tag = 'input window, operand 0']
    #allocation4 [shape = 's32[2]{0}', space=sflag, size = 0x8, scoped, tag = 'scoped memory for tpu_custom_call.1']
    #allocation5 [shape = 's32[2]{0}', space=sflag, size = 0x8, scoped, tag = 'scoped memory for tpu_custom_call.1']
    #allocation6 [shape = 'u8[131072]{0}', space=vmem, size = 0x20000, scoped, tag = 'input window, operand 1']
    #allocation7 [shape = 's32[2]{0}', space=sflag, size = 0x8, scoped, tag = 'scoped memory for tpu_custom_call.1']
    #allocation8 [shape = 'u8[131072]{0}', space=vmem, size = 0x20000, scoped, tag = 'input window, operand 2']
    #allocation9 [shape = 'u8[32768]{0}', space=vmem, size = 0x8000, scoped, tag = 'input window, operand 4, single buffered']
    #allocation10 [shape = 's32[1]{0}', space=sflag, size = 0x4, scoped, tag = 'scoped memory for tpu_custom_call.1']
    #allocation11 [shape = 'u8[32768]{0}', space=vmem, size = 0x8000, scoped, tag = 'input window, operand 6, single buffered']
    #allocation12 [shape = 'u8[131072]{0}', space=vmem, size = 0x20000, scoped, tag = 'output window, operand 0']
    %13 = vsyncpa [#allocation4], 0
    %s14 = scalar_lea.sflag [#allocation4], 1
    %15 = vsyncpa %s14, 0
    %16 = vsyncpa [#allocation7], 0
    %s17 = scalar_lea.sflag [#allocation7], 1
    %18 = vsyncpa %s17, 0
    %19 = vsyncpa [#allocation10], 0
    %20 = vsyncpa [#allocation5], 0
    %s21 = scalar_lea.sflag [#allocation5], 1
    %22 = vsyncpa %s21, 0
    loop: start=0, step=1, limit=34
    $region2: #{tpu_custom_call.1} parent=1 // loop_pre_header
      _
    $region3: #{tpu_custom_call.1} parent=1 // loop_header
      %s24 = sphi 0, %s28
      %p25 = scmp.ge.s32.totalorder %s24, 34
      %s31 = sphi 0, %s43
      %s32 = sphi 0, %s39
      %s33 = sphi 0, %s31
      %s34 = sphi 0, %s32
      %s35 = sphi 0, %s33
      %s36 = sphi 0, %s34
      %s48 = sphi 0, %s50
      %s51 = sphi 0, %s48
      %s52 = sphi 0, %s51
      %s68 = sphi 0, %s52
      %s74 = sphi 0, %s76
      %s77 = sphi 0, %s74
      %s78 = sphi 0, %s77
      %s94 = sphi 0, %s78
      %s100 = sphi 0, %s102
      %s103 = sphi 0, %s100
      %s104 = sphi 0, %s103
      %s120 = sphi 0, %s104
      %s124 = sphi 0, %s124
      %s126 = sphi 0, %s124
      %s127 = sphi 0, %s126
      %s141 = sphi 0, %s127
      %s145 = sphi 0, %s145
      %s147 = sphi 0, %s145
      %s148 = sphi 0, %s147
      %s162 = sphi 0, %s148
      %s166 = sphi 0, %s166
      %s168 = sphi 0, %s166
      %s169 = sphi 0, %s168
      %s183 = sphi 0, %s169
      %s187 = sphi 0, %s187
      %s189 = sphi 0, %s187
      %s190 = sphi 0, %s189
      %s204 = sphi 0, %s190
      %s208 = sphi 0, %s208
      %s210 = sphi 0, %s208
      %s211 = sphi 0, %s210
      %s225 = sphi 0, %s211
      %s231 = sphi 0, %s233
      %s234 = sphi 0, %s231
      %s235 = sphi 0, %s234
      %s251 = sphi 0, %s235
    $region4: #{tpu_custom_call.1} parent=1 // loop_header_branch
      %27 = sbr.rel (%p25) target = $region8
    $region5: #{tpu_custom_call.1} parent=1 // loop_body
      %s29 = ssub.s32 %s24, 1
      %s30 = ssub.s32 %s24, 2
      %s37 = sadd.s32 1, %s32
      %p38 = scmp.ge.s32.totalorder %s37, 16
      %s39 = scalar_select %p38, 0, %s37
      %s40 = sadd.s32 1, %s31
      %s41 = scalar_select %p38, %s40, %s31
      %p42 = scmp.ge.s32.totalorder %s41, 2
      %s43 = scalar_select %p42, 0, %s41
      %s44 = ssub.s32 %s32, %s39
      %s45 = ssub.s32 %s31, %s43
      %s46 = sor.u32 %s44, %s45
      %p47 = scmp.eq.s32.totalorder %s46, 0
      %s49 = sadd.s32 %s48, 1
      %s50 = scalar_select %p47, %s48, %s49
      %p53 = pneg %p47
      %p54 = scmp.eq.s32.totalorder %s24, 31
      %p55 = por %p53, %p54
      %p56 = scmp.ne.s32.totalorder %s48, %s51
      %p57 = scmp.eq.s32.totalorder %s24, 0
      %p58 = por %p56, %p57
      %p59 = scmp.ne.s32.totalorder %s48, %s51
      %p60 = scmp.eq.s32.totalorder %s29, 31
      %p61 = por %p59, %p60
      %p62 = scmp.ne.s32.totalorder %s51, %s52
      %p63 = scmp.eq.s32.totalorder %s29, 0
      %p64 = por %p62, %p63
      %p65 = scmp.ne.s32.totalorder %s51, %s52
      %p66 = scmp.eq.s32.totalorder %s30, 31
      %p67 = por %p65, %p66
      %p69 = scmp.ne.s32.totalorder %s52, %s68
      %p70 = scmp.eq.s32.totalorder %s30, 0
      %p71 = por %p69, %p70
      %s72 = ssub.s32 %s31, %s43
      %p73 = scmp.eq.s32.totalorder %s72, 0
      %s75 = sadd.s32 %s74, 1
      %s76 = scalar_select %p73, %s74, %s75
      %p79 = pneg %p73
      %p80 = scmp.eq.s32.totalorder %s24, 31
      %p81 = por %p79, %p80
      %p82 = scmp.ne.s32.totalorder %s74, %s77
      %p83 = scmp.eq.s32.totalorder %s24, 0
      %p84 = por %p82, %p83
      %p85 = scmp.ne.s32.totalorder %s74, %s77
      %p86 = scmp.eq.s32.totalorder %s29, 31
      %p87 = por %p85, %p86
      %p88 = scmp.ne.s32.totalorder %s77, %s78
      %p89 = scmp.eq.s32.totalorder %s29, 0
      %p90 = por %p88, %p89
      %p91 = scmp.ne.s32.totalorder %s77, %s78
      %p92 = scmp.eq.s32.totalorder %s30, 31
      %p93 = por %p91, %p92
      %p95 = scmp.ne.s32.totalorder %s78, %s94
      %p96 = scmp.eq.s32.totalorder %s30, 0
      %p97 = por %p95, %p96
      %s98 = ssub.s32 %s31, %s43
      %p99 = scmp.eq.s32.totalorder %s98, 0
      %s101 = sadd.s32 %s100, 1
      %s102 = scalar_select %p99, %s100, %s101
      %p105 = pneg %p99
      %p106 = scmp.eq.s32.totalorder %s24, 31
      %p107 = por %p105, %p106
      %p108 = scmp.ne.s32.totalorder %s100, %s103
      %p109 = scmp.eq.s32.totalorder %s24, 0
      %p110 = por %p108, %p109
      %p111 = scmp.ne.s32.totalorder %s100, %s103
      %p112 = scmp.eq.s32.totalorder %s29, 31
      %p113 = por %p111, %p112
      %p114 = scmp.ne.s32.totalorder %s103, %s104
      %p115 = scmp.eq.s32.totalorder %s29, 0
      %p116 = por %p114, %p115
      %p117 = scmp.ne.s32.totalorder %s103, %s104
      %p118 = scmp.eq.s32.totalorder %s30, 31
      %p119 = por %p117, %p118
      %p121 = scmp.ne.s32.totalorder %s104, %s120
      %p122 = scmp.eq.s32.totalorder %s30, 0
      %p123 = por %p121, %p122
      %s125 = sadd.s32 %s124, 1
      %p128 = scmp.eq.s32.totalorder %s24, 31
      %p129 = scmp.ne.s32.totalorder %s124, %s126
      %p130 = scmp.eq.s32.totalorder %s24, 0
      %p131 = por %p129, %p130
      %p132 = scmp.ne.s32.totalorder %s124, %s126
      %p133 = scmp.eq.s32.totalorder %s29, 31
      %p134 = por %p132, %p133
      %p135 = scmp.ne.s32.totalorder %s126, %s127
      %p136 = scmp.eq.s32.totalorder %s29, 0
      %p137 = por %p135, %p136
      %p138 = scmp.ne.s32.totalorder %s126, %s127
      %p139 = scmp.eq.s32.totalorder %s30, 31
      %p140 = por %p138, %p139
      %p142 = scmp.ne.s32.totalorder %s127, %s141
      %p143 = scmp.eq.s32.totalorder %s30, 0
      %p144 = por %p142, %p143
      %s146 = sadd.s32 %s145, 1
      %p149 = scmp.eq.s32.totalorder %s24, 31
      %p150 = scmp.ne.s32.totalorder %s145, %s147
      %p151 = scmp.eq.s32.totalorder %s24, 0
      %p152 = por %p150, %p151
      %p153 = scmp.ne.s32.totalorder %s145, %s147
      %p154 = scmp.eq.s32.totalorder %s29, 31
      %p155 = por %p153, %p154
      %p156 = scmp.ne.s32.totalorder %s147, %s148
      %p157 = scmp.eq.s32.totalorder %s29, 0
      %p158 = por %p156, %p157
      %p159 = scmp.ne.s32.totalorder %s147, %s148
      %p160 = scmp.eq.s32.totalorder %s30, 31
      %p161 = por %p159, %p160
      %p163 = scmp.ne.s32.totalorder %s148, %s162
      %p164 = scmp.eq.s32.totalorder %s30, 0
      %p165 = por %p163, %p164
      %s167 = sadd.s32 %s166, 1
      %p170 = scmp.eq.s32.totalorder %s24, 31
      %p171 = scmp.ne.s32.totalorder %s166, %s168
      %p172 = scmp.eq.s32.totalorder %s24, 0
      %p173 = por %p171, %p172
      %p174 = scmp.ne.s32.totalorder %s166, %s168
      %p175 = scmp.eq.s32.totalorder %s29, 31
      %p176 = por %p174, %p175
      %p177 = scmp.ne.s32.totalorder %s168, %s169
      %p178 = scmp.eq.s32.totalorder %s29, 0
      %p179 = por %p177, %p178
      %p180 = scmp.ne.s32.totalorder %s168, %s169
      %p181 = scmp.eq.s32.totalorder %s30, 31
      %p182 = por %p180, %p181
      %p184 = scmp.ne.s32.totalorder %s169, %s183
      %p185 = scmp.eq.s32.totalorder %s30, 0
      %p186 = por %p184, %p185
      %s188 = sadd.s32 %s187, 1
      %p191 = scmp.eq.s32.totalorder %s24, 31
      %p192 = scmp.ne.s32.totalorder %s187, %s189
      %p193 = scmp.eq.s32.totalorder %s24, 0
      %p194 = por %p192, %p193
      %p195 = scmp.ne.s32.totalorder %s187, %s189
      %p196 = scmp.eq.s32.totalorder %s29, 31
      %p197 = por %p195, %p196
      %p198 = scmp.ne.s32.totalorder %s189, %s190
      %p199 = scmp.eq.s32.totalorder %s29, 0
      %p200 = por %p198, %p199
      %p201 = scmp.ne.s32.totalorder %s189, %s190
      %p202 = scmp.eq.s32.totalorder %s30, 31
      %p203 = por %p201, %p202
      %p205 = scmp.ne.s32.totalorder %s190, %s204
      %p206 = scmp.eq.s32.totalorder %s30, 0
      %p207 = por %p205, %p206
      %s209 = sadd.s32 %s208, 1
      %p212 = scmp.eq.s32.totalorder %s24, 31
      %p213 = scmp.ne.s32.totalorder %s208, %s210
      %p214 = scmp.eq.s32.totalorder %s24, 0
      %p215 = por %p213, %p214
      %p216 = scmp.ne.s32.totalorder %s208, %s210
      %p217 = scmp.eq.s32.totalorder %s29, 31
      %p218 = por %p216, %p217
      %p219 = scmp.ne.s32.totalorder %s210, %s211
      %p220 = scmp.eq.s32.totalorder %s29, 0
      %p221 = por %p219, %p220
      %p222 = scmp.ne.s32.totalorder %s210, %s211
      %p223 = scmp.eq.s32.totalorder %s30, 31
      %p224 = por %p222, %p223
      %p226 = scmp.ne.s32.totalorder %s211, %s225
      %p227 = scmp.eq.s32.totalorder %s30, 0
      %p228 = por %p226, %p227
      %s229 = ssub.s32 %s31, %s43
      %p230 = scmp.eq.s32.totalorder %s229, 0
      %s232 = sadd.s32 %s231, 1
      %s233 = scalar_select %p230, %s231, %s232
      %p236 = pneg %p230
      %p237 = scmp.eq.s32.totalorder %s24, 31
      %p238 = por %p236, %p237
      %p239 = scmp.ne.s32.totalorder %s231, %s234
      %p240 = scmp.eq.s32.totalorder %s24, 0
      %p241 = por %p239, %p240
      %p242 = scmp.ne.s32.totalorder %s231, %s234
      %p243 = scmp.eq.s32.totalorder %s29, 31
      %p244 = por %p242, %p243
      %p245 = scmp.ne.s32.totalorder %s234, %s235
      %p246 = scmp.eq.s32.totalorder %s29, 0
      %p247 = por %p245, %p246
      %p248 = scmp.ne.s32.totalorder %s234, %s235
      %p249 = scmp.eq.s32.totalorder %s30, 31
      %p250 = por %p248, %p249
      %p252 = scmp.ne.s32.totalorder %s235, %s251
      %p253 = scmp.eq.s32.totalorder %s30, 0
      %p254 = por %p252, %p253
      %p255 = scmp.le.s32.totalorder 1, %s24
      %p256 = scmp.lt.s32.totalorder %s24, 33
      %p257 = pnand %p255, %p256
      %p258 = pneg %p257
      // Predicated region
      $region9: #{tpu_custom_call.1} parent=5 // pred_check
        _
      $region10: #{tpu_custom_call.1} parent=5 // pred_check_branch
        %260 = sbr.rel (%p257) target = $region12
      $region11: #{tpu_custom_call.1} parent=5 // pred_region
        %s261 = ssub.s32 %s24, 1
        // Predicated region
        $region13: #{tpu_custom_call.1} parent=11 // pred_check
          %p262 = pneg %p137
        $region14: #{tpu_custom_call.1} parent=11 // pred_check_branch
          %264 = sbr.rel (%p262) target = $region16
        $region15: #{tpu_custom_call.1} parent=11 // pred_region
          _
        $region16: #{tpu_custom_call.1} parent=11 // pred_fallthru
          _
        // Predicated region
        $region17: #{tpu_custom_call.1} parent=11 // pred_check
          %p265 = pneg %p158
        $region18: #{tpu_custom_call.1} parent=11 // pred_check_branch
          %267 = sbr.rel (%p265) target = $region20
        $region19: #{tpu_custom_call.1} parent=11 // pred_region
          %269 = vsyncadd [#allocation10], 0
          %s270 = sshll.u32 %s4, 4
          %s271 = int_to_ptr.hbm [resolvable:$true] %s270
          %s272 = sshll.u32 [#allocation9], 4
          %s273 = int_to_ptr.vmem [resolvable:$true] %s272
          %278 = dma.hbm_to_vmem [thread:$0]  %s271, 1024, %s273, [#allocation10], 64, 64, 4
        $region20: #{tpu_custom_call.1} parent=11 // pred_fallthru
          _
        // Predicated region
        $region21: #{tpu_custom_call.1} parent=11 // pred_check
          %p279 = pneg %p179
        $region22: #{tpu_custom_call.1} parent=11 // pred_check_branch
          %281 = sbr.rel (%p279) target = $region24
        $region23: #{tpu_custom_call.1} parent=11 // pred_region
          _
        $region24: #{tpu_custom_call.1} parent=11 // pred_fallthru
          _
        // Predicated region
        $region25: #{tpu_custom_call.1} parent=11 // pred_check
          %p282 = pneg %p200
        $region26: #{tpu_custom_call.1} parent=11 // pred_check_branch
          %284 = sbr.rel (%p282) target = $region28
        $region27: #{tpu_custom_call.1} parent=11 // pred_region
          %286 = vsyncadd [#allocation10], 0
          %s287 = sshll.u32 %s6, 4
          %s288 = int_to_ptr.hbm [resolvable:$true] %s287
          %s289 = sshll.u32 [#allocation11], 4
          %s290 = int_to_ptr.vmem [resolvable:$true] %s289
          %295 = dma.hbm_to_vmem [thread:$0]  %s288, 1024, %s290, [#allocation10], 64, 64, 4
        $region28: #{tpu_custom_call.1} parent=11 // pred_fallthru
          _
        // Predicated region
        $region29: #{tpu_custom_call.1} parent=11 // pred_check
          %p296 = pneg %p221
        $region30: #{tpu_custom_call.1} parent=11 // pred_check_branch
          %298 = sbr.rel (%p296) target = $region32
        $region31: #{tpu_custom_call.1} parent=11 // pred_region
          _
        $region32: #{tpu_custom_call.1} parent=11 // pred_fallthru
          _
      $region12: #{tpu_custom_call.1} parent=5 // pred_fallthru
        _
      %p299 = scmp.lt.s32.totalorder %s24, 32
      // Predicated region
      $region33: #{tpu_custom_call.1} parent=5 // pred_check
        %p300 = pneg %p299
      $region34: #{tpu_custom_call.1} parent=5 // pred_check_branch
        %302 = sbr.rel (%p300) target = $region36
      $region35: #{tpu_custom_call.1} parent=5 // pred_region
        // Predicated region
        $region37: #{tpu_custom_call.1} parent=35 // pred_check
          %p303 = pneg %p58
        $region38: #{tpu_custom_call.1} parent=35 // pred_check_branch
          %305 = sbr.rel (%p303) target = $region40
        $region39: #{tpu_custom_call.1} parent=35 // pred_region
          %s306 = sand.u32 %s48, 1
          %s307 = scalar_lea.sflag [#allocation4], %s306
          %s308 = sand.u32 %s48, 1
          %s309 = smul.addr %s308, 64
          %s310 = scalar_lea.vmem [#allocation3], %s309
          %s311 = smul.u32 16, %s31
          %313 = vsyncadd %s307, 0
          %s314 = smul.addr %s32, 32
          %s315 = sadd.s32 %s311, %s314
          %s316 = smul.addr %s315, 4
          %s317 = scalar_lea.hbm %s0, %s316
          %s318 = sshll.u32 %s317, 4
          %s319 = int_to_ptr.hbm [resolvable:$true] %s318
          %s320 = sshll.u32 %s310, 4
          %s321 = int_to_ptr.vmem [resolvable:$true] %s320
          %326 = dma.hbm_to_vmem [thread:$0]  %s319, 1024, %s321, %s307, 64, 64, 4
        $region40: #{tpu_custom_call.1} parent=35 // pred_fallthru
          _
        // Predicated region
        $region41: #{tpu_custom_call.1} parent=35 // pred_check
          %p327 = pneg %p84
        $region42: #{tpu_custom_call.1} parent=35 // pred_check_branch
          %329 = sbr.rel (%p327) target = $region44
        $region43: #{tpu_custom_call.1} parent=35 // pred_region
          %s330 = sand.u32 %s24, 1
          %s331 = scalar_lea.sflag [#allocation7], %s330
          %s332 = sand.u32 %s74, 1
          %s333 = smul.addr %s332, 128
          %s334 = scalar_lea.vmem [#allocation6], %s333
          %s335 = smul.u32 16, %s31
          %337 = vsyncadd %s331, 0
          %s338 = smul.addr %s335, 8
          %s339 = scalar_lea.hbm %s1, %s338
          %s340 = sshll.u32 %s339, 4
          %s341 = int_to_ptr.hbm [resolvable:$true] %s340
          %s342 = sshll.u32 %s334, 4
          %s343 = int_to_ptr.vmem [resolvable:$true] %s342
          %348 = dma.hbm_to_vmem [thread:$0]  %s341, 2048, %s343, %s331, 128, 128, 8
        $region44: #{tpu_custom_call.1} parent=35 // pred_fallthru
          _
        // Predicated region
        $region45: #{tpu_custom_call.1} parent=35 // pred_check
          %p349 = pneg %p110
        $region46: #{tpu_custom_call.1} parent=35 // pred_check_branch
          %351 = sbr.rel (%p349) target = $region48
        $region47: #{tpu_custom_call.1} parent=35 // pred_region
          %s352 = sand.u32 %s24, 1
          %s353 = scalar_lea.sflag [#allocation7], %s352
          %s354 = sand.u32 %s100, 1
          %s355 = smul.addr %s354, 128
          %s356 = scalar_lea.vmem [#allocation8], %s355
          %s357 = smul.u32 16, %s31
          %359 = vsyncadd %s353, 0
          %s360 = smul.addr %s357, 8
          %s361 = scalar_lea.hbm %s2, %s360
          %s362 = sshll.u32 %s361, 4
          %s363 = int_to_ptr.hbm [resolvable:$true] %s362
          %s364 = sshll.u32 %s356, 4
          %s365 = int_to_ptr.vmem [resolvable:$true] %s364
          %370 = dma.hbm_to_vmem [thread:$0]  %s363, 2048, %s365, %s353, 128, 128, 8
        $region48: #{tpu_custom_call.1} parent=35 // pred_fallthru
          _
      $region36: #{tpu_custom_call.1} parent=5 // pred_fallthru
        _
      %p371 = scmp.le.s32.totalorder 1, %s24
      %p372 = scmp.lt.s32.totalorder %s24, 33
      %p373 = pnand %p371, %p372
      %p374 = pneg %p373
      // Predicated region
      $region49: #{tpu_custom_call.1} parent=5 // pred_check
        _
      $region50: #{tpu_custom_call.1} parent=5 // pred_check_branch
        %376 = sbr.rel (%p373) target = $region52
      $region51: #{tpu_custom_call.1} parent=5 // pred_region
        %s377 = ssub.s32 %s24, 1
        %s378 = sand.u32 %s51, 1
        %s379 = scalar_lea.sflag [#allocation4], %s378
        %s380 = sand.u32 %s51, 1
        %s381 = smul.addr %s380, 64
        %s382 = scalar_lea.vmem [#allocation3], %s381
        // Predicated region
        $region53: #{tpu_custom_call.1} parent=51 // pred_check
          %p383 = pneg %p64
        $region54: #{tpu_custom_call.1} parent=51 // pred_check_branch
          %385 = sbr.rel (%p383) target = $region56
        $region55: #{tpu_custom_call.1} parent=51 // pred_region
          %387 = dma.done %s379, 1024
        $region56: #{tpu_custom_call.1} parent=51 // pred_fallthru
          _
        %s388 = sand.u32 %s29, 1
        %s389 = scalar_lea.sflag [#allocation7], %s388
        %s390 = sand.u32 %s77, 1
        %s391 = smul.addr %s390, 128
        %s392 = scalar_lea.vmem [#allocation6], %s391
        // Predicated region
        $region57: #{tpu_custom_call.1} parent=51 // pred_check
          %p393 = pneg %p90
        $region58: #{tpu_custom_call.1} parent=51 // pred_check_branch
          %395 = sbr.rel (%p393) target = $region60
        $region59: #{tpu_custom_call.1} parent=51 // pred_region
          %397 = dma.done %s389, 2048
        $region60: #{tpu_custom_call.1} parent=51 // pred_fallthru
          _
        %s398 = sand.u32 %s29, 1
        %s399 = scalar_lea.sflag [#allocation7], %s398
        %s400 = sand.u32 %s103, 1
        %s401 = smul.addr %s400, 128
        %s402 = scalar_lea.vmem [#allocation8], %s401
        // Predicated region
        $region61: #{tpu_custom_call.1} parent=51 // pred_check
          %p403 = pneg %p116
        $region62: #{tpu_custom_call.1} parent=51 // pred_check_branch
          %405 = sbr.rel (%p403) target = $region64
        $region63: #{tpu_custom_call.1} parent=51 // pred_region
          %407 = dma.done %s399, 2048
        $region64: #{tpu_custom_call.1} parent=51 // pred_fallthru
          _
        // Predicated region
        $region65: #{tpu_custom_call.1} parent=51 // pred_check
          %p408 = pneg %p158
        $region66: #{tpu_custom_call.1} parent=51 // pred_check_branch
          %410 = sbr.rel (%p408) target = $region68
        $region67: #{tpu_custom_call.1} parent=51 // pred_region
          %412 = dma.done [#allocation10], 1024
        $region68: #{tpu_custom_call.1} parent=51 // pred_fallthru
          _
        // Predicated region
        $region69: #{tpu_custom_call.1} parent=51 // pred_check
          %p413 = pneg %p200
        $region70: #{tpu_custom_call.1} parent=51 // pred_check_branch
          %415 = sbr.rel (%p413) target = $region72
        $region71: #{tpu_custom_call.1} parent=51 // pred_region
          %417 = dma.done [#allocation10], 1024
        $region72: #{tpu_custom_call.1} parent=51 // pred_fallthru
          _
        %s418 = sand.u32 %s51, 1
        %s419 = scalar_lea.sflag [#allocation4], %s418
        %s420 = sand.u32 %s51, 1
        %s421 = smul.addr %s420, 64
        %s422 = scalar_lea.vmem [#allocation3], %s421
        %p423 = pneg %p64
        %p424 = pneg %p61
        %s425 = sand.u32 %s29, 1
        %s426 = scalar_lea.sflag [#allocation7], %s425
        %s427 = sand.u32 %s77, 1
        %s428 = smul.addr %s427, 128
        %s429 = scalar_lea.vmem [#allocation6], %s428
        %p430 = pneg %p90
        %p431 = pneg %p87
        %s432 = sand.u32 %s29, 1
        %s433 = scalar_lea.sflag [#allocation7], %s432
        %s434 = sand.u32 %s103, 1
        %s435 = smul.addr %s434, 128
        %s436 = scalar_lea.vmem [#allocation8], %s435
        %p437 = pneg %p116
        %p438 = pneg %p113
        %p439 = pneg %p137
        %p440 = pneg %p134
        %p441 = pneg %p158
        %p442 = pneg %p155
        %p443 = pneg %p179
        %p444 = pneg %p176
        %p445 = pneg %p200
        %p446 = pneg %p197
        %p447 = pneg %p221
        %p448 = pneg %p218
        %p449 = pneg %p247
        %p450 = pneg %p244
        %s451 = sand.u32 %s234, 1
        %s452 = scalar_lea.sflag [#allocation5], %s451
        %s453 = sand.u32 %s234, 1
        %s454 = smul.addr %s453, 128
        %s455 = scalar_lea.vmem [#allocation12], %s454
        %s456 = smul.u32 16, %s33
        %s457 = smul.u32 16, %s33
        %s458 = smul.u32 16, %s33
        %s459 = smul.u32 16, %s33
        %p460 = scmp.eq.s32.totalorder %s34, 0
        // Predicated region
        $region73: #{tpu_custom_call.1} parent=51 // pred_check
          %p461 = pneg %p460
        $region74: #{tpu_custom_call.1} parent=51 // pred_check_branch
          %463 = sbr.rel (%p461) target = $region76
        $region75: #{tpu_custom_call.1} parent=51 // pred_region
          %464 = vst [vmem:[#allocation2] sm:$0xff] -inf
          %465 = vst [vmem:[#allocation2 + $0x8] sm:$0xff] -inf
          %466 = vst [vmem:[#allocation2 + $0x10] sm:$0xff] -inf
          %467 = vst [vmem:[#allocation2 + $0x18] sm:$0xff] -inf
          %468 = vst [vmem:[#allocation2 + $0x20] sm:$0xff] -inf
          %469 = vst [vmem:[#allocation2 + $0x28] sm:$0xff] -inf
          %470 = vst [vmem:[#allocation2 + $0x30] sm:$0xff] -inf
          %471 = vst [vmem:[#allocation2 + $0x38] sm:$0xff] -inf
          %472 = vst [vmem:[#allocation2 + $0x40] sm:$0xff] -inf
          %473 = vst [vmem:[#allocation2 + $0x48] sm:$0xff] -inf
          %474 = vst [vmem:[#allocation2 + $0x50] sm:$0xff] -inf
          %475 = vst [vmem:[#allocation2 + $0x58] sm:$0xff] -inf
          %476 = vst [vmem:[#allocation2 + $0x60] sm:$0xff] -inf
          %477 = vst [vmem:[#allocation2 + $0x68] sm:$0xff] -inf
          %478 = vst [vmem:[#allocation2 + $0x70] sm:$0xff] -inf
          %479 = vst [vmem:[#allocation2 + $0x78] sm:$0xff] -inf
        $region76: #{tpu_custom_call.1} parent=51 // pred_fallthru
          _
        %v480 = vld [vmem:[#allocation2] sm:$0xff]
        %v481 = vld [vmem:[#allocation2 + $0x8] sm:$0xff]
        %v482 = vld [vmem:[#allocation2 + $0x10] sm:$0xff]
        %v483 = vld [vmem:[#allocation2 + $0x18] sm:$0xff]
        %v484 = vld [vmem:[#allocation2 + $0x20] sm:$0xff]
        %v485 = vld [vmem:[#allocation2 + $0x28] sm:$0xff]
        %v486 = vld [vmem:[#allocation2 + $0x30] sm:$0xff]
        %v487 = vld [vmem:[#allocation2 + $0x38] sm:$0xff]
        %v488 = vld [vmem:[#allocation2 + $0x40] sm:$0xff]
        %v489 = vld [vmem:[#allocation2 + $0x48] sm:$0xff]
        %v490 = vld [vmem:[#allocation2 + $0x50] sm:$0xff]
        %v491 = vld [vmem:[#allocation2 + $0x58] sm:$0xff]
        %v492 = vld [vmem:[#allocation2 + $0x60] sm:$0xff]
        %v493 = vld [vmem:[#allocation2 + $0x68] sm:$0xff]
        %v494 = vld [vmem:[#allocation2 + $0x70] sm:$0xff]
        %v495 = vld [vmem:[#allocation2 + $0x78] sm:$0xff]
        %v496 = vld [vmem:[%s382] sm:$0xf]
        %v497 = vld [vmem:[%s382 + $0x4] sm:$0xf]
        %v498 = vld [vmem:[%s382 + $0x8] sm:$0xf]
        %v499 = vld [vmem:[%s382 + $0xc] sm:$0xf]
        %v500 = vld [vmem:[%s382 + $0x10] sm:$0xf]
        %v501 = vld [vmem:[%s382 + $0x14] sm:$0xf]
        %v502 = vld [vmem:[%s382 + $0x18] sm:$0xf]
        %v503 = vld [vmem:[%s382 + $0x1c] sm:$0xf]
        %v504 = vld [vmem:[%s382 + $0x20] sm:$0xf]
        %v505 = vld [vmem:[%s382 + $0x24] sm:$0xf]
        %v506 = vld [vmem:[%s382 + $0x28] sm:$0xf]
        %v507 = vld [vmem:[%s382 + $0x2c] sm:$0xf]
        %v508 = vld [vmem:[%s382 + $0x30] sm:$0xf]
        %v509 = vld [vmem:[%s382 + $0x34] sm:$0xf]
        %v510 = vld [vmem:[%s382 + $0x38] sm:$0xf]
        %v511 = vld [vmem:[%s382 + $0x3c] sm:$0xf]
        %v512 = vunpack.c.l.bf16 %v496
        %v513 = vunpack.c.l.bf16 %v497
        %v514 = vunpack.c.l.bf16 %v498
        %v515 = vunpack.c.l.bf16 %v499
        %v516 = vunpack.c.l.bf16 %v500
        %v517 = vunpack.c.l.bf16 %v501
        %v518 = vunpack.c.l.bf16 %v502
        %v519 = vunpack.c.l.bf16 %v503
        %v520 = vunpack.c.l.bf16 %v504
        %v521 = vunpack.c.l.bf16 %v505
        %v522 = vunpack.c.l.bf16 %v506
        %v523 = vunpack.c.l.bf16 %v507
        %v524 = vunpack.c.l.bf16 %v508
        %v525 = vunpack.c.l.bf16 %v509
        %v526 = vunpack.c.l.bf16 %v510
        %v527 = vunpack.c.l.bf16 %v511
        %v528 = vmax.f32 %v480, %v512
        %v529 = vmax.f32 %v481, %v513
        %v530 = vmax.f32 %v482, %v514
        %v531 = vmax.f32 %v483, %v515
        %v532 = vmax.f32 %v484, %v516
        %v533 = vmax.f32 %v485, %v517
        %v534 = vmax.f32 %v486, %v518
        %v535 = vmax.f32 %v487, %v519
        %v536 = vmax.f32 %v488, %v520
        %v537 = vmax.f32 %v489, %v521
        %v538 = vmax.f32 %v490, %v522
        %v539 = vmax.f32 %v491, %v523
        %v540 = vmax.f32 %v492, %v524
        %v541 = vmax.f32 %v493, %v525
        %v542 = vmax.f32 %v494, %v526
        %v543 = vmax.f32 %v495, %v527
        %544 = vst [vmem:[#allocation2] sm:$0xff] %v528
        %545 = vst [vmem:[#allocation2 + $0x8] sm:$0xff] %v529
        %546 = vst [vmem:[#allocation2 + $0x10] sm:$0xff] %v530
        %547 = vst [vmem:[#allocation2 + $0x18] sm:$0xff] %v531
        %548 = vst [vmem:[#allocation2 + $0x20] sm:$0xff] %v532
        %549 = vst [vmem:[#allocation2 + $0x28] sm:$0xff] %v533
        %550 = vst [vmem:[#allocation2 + $0x30] sm:$0xff] %v534
        %551 = vst [vmem:[#allocation2 + $0x38] sm:$0xff] %v535
        %552 = vst [vmem:[#allocation2 + $0x40] sm:$0xff] %v536
        %553 = vst [vmem:[#allocation2 + $0x48] sm:$0xff] %v537
        %554 = vst [vmem:[#allocation2 + $0x50] sm:$0xff] %v538
        %555 = vst [vmem:[#allocation2 + $0x58] sm:$0xff] %v539
        %556 = vst [vmem:[#allocation2 + $0x60] sm:$0xff] %v540
        %557 = vst [vmem:[#allocation2 + $0x68] sm:$0xff] %v541
        %558 = vst [vmem:[#allocation2 + $0x70] sm:$0xff] %v542
        %559 = vst [vmem:[#allocation2 + $0x78] sm:$0xff] %v543
        %p560 = scmp.eq.s32.totalorder %s34, 15
        // Predicated region
        $region77: #{tpu_custom_call.1} parent=51 // pred_check
          %p561 = pneg %p560
        $region78: #{tpu_custom_call.1} parent=51 // pred_check_branch
          %563 = sbr.rel (%p561) target = $region80
        $region79: #{tpu_custom_call.1} parent=51 // pred_region
          %v564 = vld [vmem:[#allocation2] sm:$0xff]
          %v565 = vld [vmem:[#allocation2 + $0x8] sm:$0xff]
          %v566 = vld [vmem:[#allocation2 + $0x10] sm:$0xff]
          %v567 = vld [vmem:[#allocation2 + $0x18] sm:$0xff]
          %v568 = vld [vmem:[#allocation2 + $0x20] sm:$0xff]
          %v569 = vld [vmem:[#allocation2 + $0x28] sm:$0xff]
          %v570 = vld [vmem:[#allocation2 + $0x30] sm:$0xff]
          %v571 = vld [vmem:[#allocation2 + $0x38] sm:$0xff]
          %v572 = vld [vmem:[#allocation2 + $0x40] sm:$0xff]
          %v573 = vld [vmem:[#allocation2 + $0x48] sm:$0xff]
          %v574 = vld [vmem:[#allocation2 + $0x50] sm:$0xff]
          %v575 = vld [vmem:[#allocation2 + $0x58] sm:$0xff]
          %v576 = vld [vmem:[#allocation2 + $0x60] sm:$0xff]
          %v577 = vld [vmem:[#allocation2 + $0x68] sm:$0xff]
          %v578 = vld [vmem:[#allocation2 + $0x70] sm:$0xff]
          %v579 = vld [vmem:[#allocation2 + $0x78] sm:$0xff]
          %v580 = vld [vmem:[%s392] sm:$0xff]
          %v581 = vld [vmem:[%s392 + $0x8] sm:$0xff]
          %v582 = vld [vmem:[%s392 + $0x10] sm:$0xff]
          %v583 = vld [vmem:[%s392 + $0x18] sm:$0xff]
          %v584 = vld [vmem:[%s392 + $0x20] sm:$0xff]
          %v585 = vld [vmem:[%s392 + $0x28] sm:$0xff]
          %v586 = vld [vmem:[%s392 + $0x30] sm:$0xff]
          %v587 = vld [vmem:[%s392 + $0x38] sm:$0xff]
          %v588 = vld [vmem:[%s392 + $0x40] sm:$0xff]
          %v589 = vld [vmem:[%s392 + $0x48] sm:$0xff]
          %v590 = vld [vmem:[%s392 + $0x50] sm:$0xff]
          %v591 = vld [vmem:[%s392 + $0x58] sm:$0xff]
          %v592 = vld [vmem:[%s392 + $0x60] sm:$0xff]
          %v593 = vld [vmem:[%s392 + $0x68] sm:$0xff]
          %v594 = vld [vmem:[%s392 + $0x70] sm:$0xff]
          %v595 = vld [vmem:[%s392 + $0x78] sm:$0xff]
          %v596 = vsub.f32 %v564, %v580
          %v597 = vsub.f32 %v565, %v581
          %v598 = vsub.f32 %v566, %v582
          %v599 = vsub.f32 %v567, %v583
          %v600 = vsub.f32 %v568, %v584
          %v601 = vsub.f32 %v569, %v585
          %v602 = vsub.f32 %v570, %v586
          %v603 = vsub.f32 %v571, %v587
          %v604 = vsub.f32 %v572, %v588
          %v605 = vsub.f32 %v573, %v589
          %v606 = vsub.f32 %v574, %v590
          %v607 = vsub.f32 %v575, %v591
          %v608 = vsub.f32 %v576, %v592
          %v609 = vsub.f32 %v577, %v593
          %v610 = vsub.f32 %v578, %v594
          %v611 = vsub.f32 %v579, %v595
          %v612 = vld [vmem:[%s3] sm:$0x1]
          %v614 = vperm.slane %v612, 0
          %v616 = vadd.f32 %v596, %v614
          %v617 = vadd.f32 %v597, %v614
          %v618 = vadd.f32 %v598, %v614
          %v619 = vadd.f32 %v599, %v614
          %v620 = vadd.f32 %v600, %v614
          %v621 = vadd.f32 %v601, %v614
          %v622 = vadd.f32 %v602, %v614
          %v623 = vadd.f32 %v603, %v614
          %v624 = vadd.f32 %v604, %v614
          %v625 = vadd.f32 %v605, %v614
          %v626 = vadd.f32 %v606, %v614
          %v627 = vadd.f32 %v607, %v614
          %v628 = vadd.f32 %v608, %v614
          %v629 = vadd.f32 %v609, %v614
          %v630 = vadd.f32 %v610, %v614
          %v631 = vadd.f32 %v611, %v614
          %v632 = vmax.f32 %v616, 0.0
          %v633 = vmax.f32 %v617, 0.0
          %v634 = vmax.f32 %v618, 0.0
          %v635 = vmax.f32 %v619, 0.0
          %v636 = vmax.f32 %v620, 0.0
          %v637 = vmax.f32 %v621, 0.0
          %v638 = vmax.f32 %v622, 0.0
          %v639 = vmax.f32 %v623, 0.0
          %v640 = vmax.f32 %v624, 0.0
          %v641 = vmax.f32 %v625, 0.0
          %v642 = vmax.f32 %v626, 0.0
          %v643 = vmax.f32 %v627, 0.0
          %v644 = vmax.f32 %v628, 0.0
          %v645 = vmax.f32 %v629, 0.0
          %v646 = vmax.f32 %v630, 0.0
          %v647 = vmax.f32 %v631, 0.0
          %v648 = vpack.c.bf16 %v633, %v632
          %v649 = vpack.c.bf16 %v635, %v634
          %v650 = vpack.c.bf16 %v637, %v636
          %v651 = vpack.c.bf16 %v639, %v638
          %v652 = vpack.c.bf16 %v641, %v640
          %v653 = vpack.c.bf16 %v643, %v642
          %v654 = vpack.c.bf16 %v645, %v644
          %v655 = vpack.c.bf16 %v647, %v646
          %v656 = vld [vmem:[#allocation9] sm:$0xf]
          %v657 = vld [vmem:[#allocation9 + $0x4] sm:$0xf]
          %v658 = vld [vmem:[#allocation9 + $0x8] sm:$0xf]
          %v659 = vld [vmem:[#allocation9 + $0xc] sm:$0xf]
          %v660 = vld [vmem:[#allocation9 + $0x10] sm:$0xf]
          %v661 = vld [vmem:[#allocation9 + $0x14] sm:$0xf]
          %v662 = vld [vmem:[#allocation9 + $0x18] sm:$0xf]
          %v663 = vld [vmem:[#allocation9 + $0x1c] sm:$0xf]
          %v664 = vld [vmem:[#allocation9 + $0x20] sm:$0xf]
          %v665 = vld [vmem:[#allocation9 + $0x24] sm:$0xf]
          %v666 = vld [vmem:[#allocation9 + $0x28] sm:$0xf]
          %v667 = vld [vmem:[#allocation9 + $0x2c] sm:$0xf]
          %v668 = vld [vmem:[#allocation9 + $0x30] sm:$0xf]
          %v669 = vld [vmem:[#allocation9 + $0x34] sm:$0xf]
          %v670 = vld [vmem:[#allocation9 + $0x38] sm:$0xf]
          %v671 = vld [vmem:[#allocation9 + $0x3c] sm:$0xf]
          %v672 = vld [vmem:[%s5] sm:$0x1]
          %v674 = vperm.slane %v672, 0
          %v692 = vunpack.c.l.b16 %v656
          %v693 = vunpack.c.l.b16 %v657
          %v694 = vunpack.c.l.b16 %v658
          %v695 = vunpack.c.l.b16 %v659
          %v696 = vunpack.c.l.b16 %v660
          %v697 = vunpack.c.l.b16 %v661
          %v698 = vunpack.c.l.b16 %v662
          %v699 = vunpack.c.l.b16 %v663
          %v700 = vunpack.c.l.b16 %v664
          %v701 = vunpack.c.l.b16 %v665
          %v702 = vunpack.c.l.b16 %v666
          %v703 = vunpack.c.l.b16 %v667
          %v704 = vunpack.c.l.b16 %v668
          %v705 = vunpack.c.l.b16 %v669
          %v706 = vunpack.c.l.b16 %v670
          %v707 = vunpack.c.l.b16 %v671
          %v708 = vpack.c.b16 %v693, %v692
          %v709 = vpack.c.b16 %v695, %v694
          %v710 = vpack.c.b16 %v697, %v696
          %v711 = vpack.c.b16 %v699, %v698
          %v712 = vpack.c.b16 %v701, %v700
          %v713 = vpack.c.b16 %v703, %v702
          %v714 = vpack.c.b16 %v705, %v704
          %v715 = vpack.c.b16 %v707, %v706
          %724 = vmatpush.bf16.msra.mxu0 %v715
          %725 = vmatpush.bf16.msra.mxu0 %v714
          %726 = vmatpush.bf16.msra.mxu0 %v713
          %727 = vmatpush.bf16.msra.mxu0 %v712
          %728 = vmatpush.bf16.msra.mxu0 %v711
          %729 = vmatpush.bf16.msra.mxu0 %v710
          %730 = vmatpush.bf16.msra.mxu0 %v709
          %731 = vmatpush.bf16.msra.mxu0 %v708
          %732 = vmatmul.bf16.gmra.mxu0 %v648
          %v733 = vpop.f32.mrf.mxu0
          %v734 = vadd.f32 %v674, %v733
          %v735 = vpop.f32.mrf.mxu0
          %v736 = vadd.f32 %v674, %v735
          %737 = vmatmul.bf16.gmra.mxu0 %v649
          %v738 = vpop.f32.mrf.mxu0
          %v739 = vadd.f32 %v674, %v738
          %v740 = vpop.f32.mrf.mxu0
          %v741 = vadd.f32 %v674, %v740
          %742 = vmatmul.bf16.gmra.mxu0 %v650
          %v743 = vpop.f32.mrf.mxu0
          %v744 = vadd.f32 %v674, %v743
          %v745 = vpop.f32.mrf.mxu0
          %v746 = vadd.f32 %v674, %v745
          %747 = vmatmul.bf16.gmra.mxu0 %v651
          %v748 = vpop.f32.mrf.mxu0
          %v749 = vadd.f32 %v674, %v748
          %v750 = vpop.f32.mrf.mxu0
          %v751 = vadd.f32 %v674, %v750
          %752 = vmatmul.bf16.gmra.mxu0 %v652
          %v753 = vpop.f32.mrf.mxu0
          %v754 = vadd.f32 %v674, %v753
          %v755 = vpop.f32.mrf.mxu0
          %v756 = vadd.f32 %v674, %v755
          %757 = vmatmul.bf16.gmra.mxu0 %v653
          %v758 = vpop.f32.mrf.mxu0
          %v759 = vadd.f32 %v674, %v758
          %v760 = vpop.f32.mrf.mxu0
          %v761 = vadd.f32 %v674, %v760
          %762 = vmatmul.bf16.gmra.mxu0 %v654
          %v763 = vpop.f32.mrf.mxu0
          %v764 = vadd.f32 %v674, %v763
          %v765 = vpop.f32.mrf.mxu0
          %v766 = vadd.f32 %v674, %v765
          %767 = vmatmul.bf16.gmra.mxu0 %v655
          %v768 = vpop.f32.mrf.mxu0
          %v769 = vadd.f32 %v674, %v768
          %v770 = vpop.f32.mrf.mxu0
          %v771 = vadd.f32 %v674, %v770
          %772 = vdwg.mxu0
          %v773 = vmax.f32 %v734, 0.0
          %v774 = vmax.f32 %v736, 0.0
          %v775 = vmax.f32 %v739, 0.0
          %v776 = vmax.f32 %v741, 0.0
          %v777 = vmax.f32 %v744, 0.0
          %v778 = vmax.f32 %v746, 0.0
          %v779 = vmax.f32 %v749, 0.0
          %v780 = vmax.f32 %v751, 0.0
          %v781 = vmax.f32 %v754, 0.0
          %v782 = vmax.f32 %v756, 0.0
          %v783 = vmax.f32 %v759, 0.0
          %v784 = vmax.f32 %v761, 0.0
          %v785 = vmax.f32 %v764, 0.0
          %v786 = vmax.f32 %v766, 0.0
          %v787 = vmax.f32 %v769, 0.0
          %v788 = vmax.f32 %v771, 0.0
          %v789 = vpack.c.bf16 %v774, %v773
          %v790 = vpack.c.bf16 %v776, %v775
          %v791 = vpack.c.bf16 %v778, %v777
          %v792 = vpack.c.bf16 %v780, %v779
          %v793 = vpack.c.bf16 %v782, %v781
          %v794 = vpack.c.bf16 %v784, %v783
          %v795 = vpack.c.bf16 %v786, %v785
          %v796 = vpack.c.bf16 %v788, %v787
          %v797 = vld [vmem:[#allocation11] sm:$0xf]
          %v798 = vld [vmem:[#allocation11 + $0x4] sm:$0xf]
          %v799 = vld [vmem:[#allocation11 + $0x8] sm:$0xf]
          %v800 = vld [vmem:[#allocation11 + $0xc] sm:$0xf]
          %v801 = vld [vmem:[#allocation11 + $0x10] sm:$0xf]
          %v802 = vld [vmem:[#allocation11 + $0x14] sm:$0xf]
          %v803 = vld [vmem:[#allocation11 + $0x18] sm:$0xf]
          %v804 = vld [vmem:[#allocation11 + $0x1c] sm:$0xf]
          %v805 = vld [vmem:[#allocation11 + $0x20] sm:$0xf]
          %v806 = vld [vmem:[#allocation11 + $0x24] sm:$0xf]
          %v807 = vld [vmem:[#allocation11 + $0x28] sm:$0xf]
          %v808 = vld [vmem:[#allocation11 + $0x2c] sm:$0xf]
          %v809 = vld [vmem:[#allocation11 + $0x30] sm:$0xf]
          %v810 = vld [vmem:[#allocation11 + $0x34] sm:$0xf]
          %v811 = vld [vmem:[#allocation11 + $0x38] sm:$0xf]
          %v812 = vld [vmem:[#allocation11 + $0x3c] sm:$0xf]
          %v813 = vld [vmem:[%s7] sm:$0x1]
          %v815 = vperm.slane %v813, 0
          %v833 = vunpack.c.l.b16 %v797
          %v834 = vunpack.c.l.b16 %v798
          %v835 = vunpack.c.l.b16 %v799
          %v836 = vunpack.c.l.b16 %v800
          %v837 = vunpack.c.l.b16 %v801
          %v838 = vunpack.c.l.b16 %v802
          %v839 = vunpack.c.l.b16 %v803
          %v840 = vunpack.c.l.b16 %v804
          %v841 = vunpack.c.l.b16 %v805
          %v842 = vunpack.c.l.b16 %v806
          %v843 = vunpack.c.l.b16 %v807
          %v844 = vunpack.c.l.b16 %v808
          %v845 = vunpack.c.l.b16 %v809
          %v846 = vunpack.c.l.b16 %v810
          %v847 = vunpack.c.l.b16 %v811
          %v848 = vunpack.c.l.b16 %v812
          %v849 = vpack.c.b16 %v834, %v833
          %v850 = vpack.c.b16 %v836, %v835
          %v851 = vpack.c.b16 %v838, %v837
          %v852 = vpack.c.b16 %v840, %v839
          %v853 = vpack.c.b16 %v842, %v841
          %v854 = vpack.c.b16 %v844, %v843
          %v855 = vpack.c.b16 %v846, %v845
          %v856 = vpack.c.b16 %v848, %v847
          %865 = vmatpush.bf16.msra.mxu0 %v856
          %866 = vmatpush.bf16.msra.mxu0 %v855
          %867 = vmatpush.bf16.msra.mxu0 %v854
          %868 = vmatpush.bf16.msra.mxu0 %v853
          %869 = vmatpush.bf16.msra.mxu0 %v852
          %870 = vmatpush.bf16.msra.mxu0 %v851
          %871 = vmatpush.bf16.msra.mxu0 %v850
          %872 = vmatpush.bf16.msra.mxu0 %v849
          %873 = vmatmul.bf16.gmra.mxu0 %v789
          %v874 = vpop.f32.mrf.mxu0
          %v875 = vadd.f32 %v815, %v874
          %v876 = vpop.f32.mrf.mxu0
          %v877 = vadd.f32 %v815, %v876
          %878 = vmatmul.bf16.gmra.mxu0 %v790
          %v879 = vpop.f32.mrf.mxu0
          %v880 = vadd.f32 %v815, %v879
          %v881 = vpop.f32.mrf.mxu0
          %v882 = vadd.f32 %v815, %v881
          %883 = vmatmul.bf16.gmra.mxu0 %v791
          %v884 = vpop.f32.mrf.mxu0
          %v885 = vadd.f32 %v815, %v884
          %v886 = vpop.f32.mrf.mxu0
          %v887 = vadd.f32 %v815, %v886
          %888 = vmatmul.bf16.gmra.mxu0 %v792
          %v889 = vpop.f32.mrf.mxu0
          %v890 = vadd.f32 %v815, %v889
          %v891 = vpop.f32.mrf.mxu0
          %v892 = vadd.f32 %v815, %v891
          %893 = vmatmul.bf16.gmra.mxu0 %v793
          %v894 = vpop.f32.mrf.mxu0
          %v895 = vadd.f32 %v815, %v894
          %v896 = vpop.f32.mrf.mxu0
          %v897 = vadd.f32 %v815, %v896
          %898 = vmatmul.bf16.gmra.mxu0 %v794
          %v899 = vpop.f32.mrf.mxu0
          %v900 = vadd.f32 %v815, %v899
          %v901 = vpop.f32.mrf.mxu0
          %v902 = vadd.f32 %v815, %v901
          %903 = vmatmul.bf16.gmra.mxu0 %v795
          %v904 = vpop.f32.mrf.mxu0
          %v905 = vadd.f32 %v815, %v904
          %v906 = vpop.f32.mrf.mxu0
          %v907 = vadd.f32 %v815, %v906
          %908 = vmatmul.bf16.gmra.mxu0 %v796
          %v909 = vpop.f32.mrf.mxu0
          %v910 = vadd.f32 %v815, %v909
          %v911 = vpop.f32.mrf.mxu0
          %v912 = vadd.f32 %v815, %v911
          %913 = vdwg.mxu0
          %v914 = vld [vmem:[%s402] sm:$0xff]
          %v915 = vld [vmem:[%s402 + $0x8] sm:$0xff]
          %v916 = vld [vmem:[%s402 + $0x10] sm:$0xff]
          %v917 = vld [vmem:[%s402 + $0x18] sm:$0xff]
          %v918 = vld [vmem:[%s402 + $0x20] sm:$0xff]
          %v919 = vld [vmem:[%s402 + $0x28] sm:$0xff]
          %v920 = vld [vmem:[%s402 + $0x30] sm:$0xff]
          %v921 = vld [vmem:[%s402 + $0x38] sm:$0xff]
          %v922 = vld [vmem:[%s402 + $0x40] sm:$0xff]
          %v923 = vld [vmem:[%s402 + $0x48] sm:$0xff]
          %v924 = vld [vmem:[%s402 + $0x50] sm:$0xff]
          %v925 = vld [vmem:[%s402 + $0x58] sm:$0xff]
          %v926 = vld [vmem:[%s402 + $0x60] sm:$0xff]
          %v927 = vld [vmem:[%s402 + $0x68] sm:$0xff]
          %v928 = vld [vmem:[%s402 + $0x70] sm:$0xff]
          %v929 = vld [vmem:[%s402 + $0x78] sm:$0xff]
          %v930 = vadd.f32 %v875, %v914
          %v931 = vadd.f32 %v877, %v915
          %v932 = vadd.f32 %v880, %v916
          %v933 = vadd.f32 %v882, %v917
          %v934 = vadd.f32 %v885, %v918
          %v935 = vadd.f32 %v887, %v919
          %v936 = vadd.f32 %v890, %v920
          %v937 = vadd.f32 %v892, %v921
          %v938 = vadd.f32 %v895, %v922
          %v939 = vadd.f32 %v897, %v923
          %v940 = vadd.f32 %v900, %v924
          %v941 = vadd.f32 %v902, %v925
          %v942 = vadd.f32 %v905, %v926
          %v943 = vadd.f32 %v907, %v927
          %v944 = vadd.f32 %v910, %v928
          %v945 = vadd.f32 %v912, %v929
          %v946 = vmax.f32 %v930, 0.0
          %v947 = vmax.f32 %v931, 0.0
          %v948 = vmax.f32 %v932, 0.0
          %v949 = vmax.f32 %v933, 0.0
          %v950 = vmax.f32 %v934, 0.0
          %v951 = vmax.f32 %v935, 0.0
          %v952 = vmax.f32 %v936, 0.0
          %v953 = vmax.f32 %v937, 0.0
          %v954 = vmax.f32 %v938, 0.0
          %v955 = vmax.f32 %v939, 0.0
          %v956 = vmax.f32 %v940, 0.0
          %v957 = vmax.f32 %v941, 0.0
          %v958 = vmax.f32 %v942, 0.0
          %v959 = vmax.f32 %v943, 0.0
          %v960 = vmax.f32 %v944, 0.0
          %v961 = vmax.f32 %v945, 0.0
          %962 = vst [vmem:[%s455] sm:$0xff] %v946
          %963 = vst [vmem:[%s455 + $0x8] sm:$0xff] %v947
          %964 = vst [vmem:[%s455 + $0x10] sm:$0xff] %v948
          %965 = vst [vmem:[%s455 + $0x18] sm:$0xff] %v949
          %966 = vst [vmem:[%s455 + $0x20] sm:$0xff] %v950
          %967 = vst [vmem:[%s455 + $0x28] sm:$0xff] %v951
          %968 = vst [vmem:[%s455 + $0x30] sm:$0xff] %v952
          %969 = vst [vmem:[%s455 + $0x38] sm:$0xff] %v953
          %970 = vst [vmem:[%s455 + $0x40] sm:$0xff] %v954
          %971 = vst [vmem:[%s455 + $0x48] sm:$0xff] %v955
          %972 = vst [vmem:[%s455 + $0x50] sm:$0xff] %v956
          %973 = vst [vmem:[%s455 + $0x58] sm:$0xff] %v957
          %974 = vst [vmem:[%s455 + $0x60] sm:$0xff] %v958
          %975 = vst [vmem:[%s455 + $0x68] sm:$0xff] %v959
          %976 = vst [vmem:[%s455 + $0x70] sm:$0xff] %v960
          %977 = vst [vmem:[%s455 + $0x78] sm:$0xff] %v961
        $region80: #{tpu_custom_call.1} parent=51 // pred_fallthru
          _
        %s978 = sand.u32 %s234, 1
        %s979 = scalar_lea.sflag [#allocation5], %s978
        %s980 = sand.u32 %s234, 1
        %s981 = smul.addr %s980, 128
        %s982 = scalar_lea.vmem [#allocation12], %s981
        // Predicated region
        $region81: #{tpu_custom_call.1} parent=51 // pred_check
          %p983 = pneg %p244
        $region82: #{tpu_custom_call.1} parent=51 // pred_check_branch
          %985 = sbr.rel (%p983) target = $region84
        $region83: #{tpu_custom_call.1} parent=51 // pred_region
          %s986 = smul.u32 16, %s33
          %988 = vsyncadd %s979, 0
          %s989 = smul.addr %s986, 8
          %s990 = scalar_lea.hbm %s8, %s989
          %s991 = sshll.u32 %s982, 4
          %s992 = int_to_ptr.vmem [resolvable:$true] %s991
          %s993 = sshll.u32 %s990, 4
          %s994 = int_to_ptr.hbm [resolvable:$true] %s993
          %999 = dma.vmem_to_hbm [thread:$0]  %s992, 2048, %s994, %s979, 128, 128, 8
        $region84: #{tpu_custom_call.1} parent=51 // pred_fallthru
          _
      $region52: #{tpu_custom_call.1} parent=5 // pred_fallthru
        _
      %p1000 = scmp.le.s32.totalorder 2, %s24
      // Predicated region
      $region85: #{tpu_custom_call.1} parent=5 // pred_check
        %p1001 = pneg %p1000
      $region86: #{tpu_custom_call.1} parent=5 // pred_check_branch
        %1003 = sbr.rel (%p1001) target = $region88
      $region87: #{tpu_custom_call.1} parent=5 // pred_region
        %s1004 = ssub.s32 %s24, 2
        // Predicated region
        $region89: #{tpu_custom_call.1} parent=87 // pred_check
          %p1005 = pneg %p250
        $region90: #{tpu_custom_call.1} parent=87 // pred_check_branch
          %1007 = sbr.rel (%p1005) target = $region92
        $region91: #{tpu_custom_call.1} parent=87 // pred_region
          %s1008 = sand.u32 %s235, 1
          %s1009 = scalar_lea.sflag [#allocation5], %s1008
          %s1010 = sand.u32 %s235, 1
          %s1011 = smul.addr %s1010, 128
          %s1012 = scalar_lea.vmem [#allocation12], %s1011
          %1014 = dma.done %s1009, 2048
        $region92: #{tpu_custom_call.1} parent=87 // pred_fallthru
          _
      $region88: #{tpu_custom_call.1} parent=5 // pred_fallthru
        _
    $region6: #{tpu_custom_call.1} parent=1 // loop_footer
      %s28 = sadd.s32 1, %s24
    $region7: #{tpu_custom_call.1} parent=1 // loop_footer_branch
      %23 = sbr.rel target = $region3
    $region8: #{tpu_custom_call.1} parent=1 // loop_exit
      _
    %1015 = vsyncpa [#allocation4], 1
    %s1016 = scalar_lea.sflag [#allocation4], 1
    %1017 = vsyncpa %s1016, 1
    %1018 = vsyncpa [#allocation7], 1
    %s1019 = scalar_lea.sflag [#allocation7], 1
    %1020 = vsyncpa %s1019, 1
    %1021 = vsyncpa [#allocation10], 1
    %1022 = vsyncpa [#allocation5], 1
    %s1023 = scalar_lea.sflag [#allocation5], 1
    %1024 = vsyncpa %s1023, 1

</llo_original>
